<compile_context>
chip_gen: v6e
topology: v6e:2x2x1
jax: 0.10.0
libtpu: 0.0.40
codegen_flags: <defaults>
</compile_context>

<pallas_src>
import functools

import jax
import jax.numpy as jnp
from jax import lax
from jax.experimental import pallas as pl
from jax.experimental.pallas import tpu as pltpu

_LANE = 128
_SUBLANE_BF16 = 16
_VMEM_BUDGET = 48 * 1024 * 1024      # safe on v7x (64 MiB) and v5e/v6e (128 MiB)
_VMEM_HEADROOM = 4 * 1024 * 1024


def _round_up(x, m):
    return ((x + m - 1) // m) * m


def _vmem_limit(estimate):
    return int(min(56 * 1024 * 1024,
                   max(estimate + _VMEM_HEADROOM, 32 * 1024 * 1024)))


# ---------------------------------------------------------------------------
# Pass 1: per-feature standardization over the full batch, bf16 output.
# Runs once per feature tile (O(B*D) total), hoisted out of the (i, j) loop.
# ---------------------------------------------------------------------------
def _standardize_kernel(xl_ref, xr_ref, zl_ref, zr_ref, *,
                        batch_size, batch_pad, eps):
    inv_b = jnp.float32(1.0 / batch_size)
    inv_bm1 = jnp.float32(1.0 / (batch_size - 1))

    def standardize(x):
        # Padded batch rows are exactly zero, so the sum over the padded axis
        # equals the sum over the true batch; the variance is corrected for
        # the (0 - mean)^2 terms the pad rows add, and pad rows are masked
        # back to z == 0 so they contribute nothing downstream.
        mean = jnp.sum(x, axis=0, keepdims=True) * inv_b
        c = x - mean
        ss = jnp.sum(c * c, axis=0, keepdims=True)
        if batch_pad:
            ss = ss - jnp.float32(batch_pad) * mean * mean
        var = ss * inv_bm1
        z = c * lax.rsqrt(var + jnp.float32(eps))       # rsqrt -> EUP slot
        if batch_pad:
            rows = lax.broadcasted_iota(jnp.int32, z.shape, 0)
            z = jnp.where(rows < batch_size, z, 0.0)
        return z.astype(jnp.bfloat16)

    zl_ref[...] = standardize(xl_ref[...].astype(jnp.float32))
    zr_ref[...] = standardize(xr_ref[...].astype(jnp.float32))


# ---------------------------------------------------------------------------
# Pass 2: tiled (TD, TD) cross-correlation blocks, reduced to one scalar per
# row tile.  Left slab resident across the j sweep; right slab streamed.
# ---------------------------------------------------------------------------
def _cc_tile_kernel(zl_ref, zr_ref, out_ref, *, offdiag_lambda, batch_size):
    i = pl.program_id(0)   # row tile of cc (left feature slab, resident)
    j = pl.program_id(1)   # col tile of cc (right feature slab, streamed)

    @pl.when(j == 0)
    def _():
        out_ref[...] = jnp.zeros_like(out_ref)

    inv_b = jnp.float32(1.0 / batch_size)
    inv_b2 = inv_b * inv_b
    lam = jnp.float32(offdiag_lambda)

    # Unscaled (TD, TD) cc tile: contract the batch axis on the MXU with bf16
    # operands and f32 accumulation.  All 1/B and lambda scaling is folded
    # into the scalar reductions (no elementwise rescale of the tile).
    cc_raw = lax.dot_general(
        zl_ref[...], zr_ref[...],
        dimension_numbers=(((0,), (0,)), ((), ())),
        preferred_element_type=jnp.float32)

    contrib = lam * inv_b2 * jnp.sum(cc_raw * cc_raw)
    out_ref[...] = out_ref[...] + contrib

    # Diagonal terms only on diagonal tiles.  The diagonal is taken from the
    # same cc_raw values as the full-tile sum above, so the off-diagonal
    # subtraction cancels the diagonal exactly.
    @pl.when(i == j)
    def _():
        td = cc_raw.shape[0]
        rows = lax.broadcasted_iota(jnp.int32, cc_raw.shape, 0)
        cols = lax.broadcasted_iota(jnp.int32, cc_raw.shape, 1)
        diag = jnp.sum(jnp.where(rows == cols, cc_raw, 0.0),
                       axis=0, keepdims=True)            # (1, TD) raw diag
        d_sum = jnp.sum(diag)
        d_sq = jnp.sum(diag * diag)
        # sum_k [(d_k/B - 1)^2 - lambda * (d_k/B)^2]
        diag_terms = ((jnp.float32(1.0) - lam) * inv_b2 * d_sq
                      - jnp.float32(2.0) * inv_b * d_sum
                      + jnp.float32(td))
        out_ref[...] = out_ref[...] + diag_terms


def barlow_twins_loss(embeddings_left, embeddings_right,
                      offdiag_lambda=1.0, eps=1e-12, tile_d=1024):
    shape_left, shape_right = embeddings_left.shape, embeddings_right.shape
    if len(shape_left) != 2:
        raise ValueError(f"Left shape should be (batch_size, feature_dim), got {shape_left}")
    if len(shape_right) != 2:
        raise ValueError(f"Right shape should be (batch_size, feature_dim), got {shape_right}")
    if shape_left[0] == 1:
        raise ValueError(f"Batch size should be >= 2, got {shape_left[0]}")
    if shape_left != shape_right:
        raise ValueError(f"Shapes should be equal, got {shape_left} and {shape_right}")

    B, D = shape_left

    # Batch padded to the bf16 sublane pack; padded rows end up with z == 0.
    b_pad = _round_up(B, _SUBLANE_BF16)
    batch_pad = b_pad - B

    # Main-kernel feature tile: lane-dense, shrunk until the double-buffered
    # bf16 windows + cc-tile temporaries fit the cross-generation VMEM budget.
    td = _round_up(min(int(tile_d), _round_up(D, _LANE)), _LANE)

    def _main_vmem(t):
        windows = 2 * 2 * b_pad * t * 2          # zl + zr, 2 buffers, bf16
        temps = 5 * t * t * 4                    # cc tile + elementwise temps
        return windows + temps

    while td > _LANE and _main_vmem(td) > _VMEM_BUDGET:
        td = max(_LANE, _round_up(td // 2, _LANE))

    d_pad = _round_up(D, td)
    num_tiles = d_pad // td
    if num_tiles > 1 and num_tiles % 2:
        # Even row-tile count so both v7x TensorCores get equal i-ranges.
        d_pad += td
        num_tiles += 1
    feat_pad = d_pad - D

    left, right = embeddings_left, embeddings_right
    if batch_pad or feat_pad:
        pad = ((0, batch_pad), (0, feat_pad))
        left = jnp.pad(left, pad)
        right = jnp.pad(right, pad)

    # ---- pass 1: standardize + bf16 cast (runs once) ----
    def _pre_vmem(t):
        return (2 * 2 * b_pad * t * 4            # f32 inputs, 2 buffers
                + 2 * 2 * b_pad * t * 2          # bf16 outputs, 2 buffers
                + 6 * b_pad * t * 4)             # elementwise temps

    tp = _LANE
    for cand in range(_LANE, min(td, 512) + 1, _LANE):
        if td % cand == 0 and _pre_vmem(cand) <= _VMEM_BUDGET:
            tp = cand
    num_ptiles = d_pad // tp

    std_kernel = functools.partial(
        _standardize_kernel, batch_size=B, batch_pad=batch_pad, eps=float(eps))
    zl, zr = pl.pallas_call(
        std_kernel,
        out_shape=(jax.ShapeDtypeStruct((b_pad, d_pad), jnp.bfloat16),
                   jax.ShapeDtypeStruct((b_pad, d_pad), jnp.bfloat16)),
        grid=(num_ptiles,),
        in_specs=[pl.BlockSpec((b_pad, tp), lambda i: (0, i)),
                  pl.BlockSpec((b_pad, tp), lambda i: (0, i))],
        out_specs=[pl.BlockSpec((b_pad, tp), lambda i: (0, i)),
                   pl.BlockSpec((b_pad, tp), lambda i: (0, i))],
        compiler_params=pltpu.CompilerParams(
            dimension_semantics=("parallel",),
            vmem_limit_bytes=_vmem_limit(_pre_vmem(tp)),
        ),
    )(left, right)

    # ---- pass 2: tiled cross-correlation reduction ----
    cc_kernel = functools.partial(
        _cc_tile_kernel, offdiag_lambda=float(offdiag_lambda), batch_size=B)
    partials = pl.pallas_call(
        cc_kernel,
        out_shape=jax.ShapeDtypeStruct((1, num_tiles * _LANE), jnp.float32),
        grid_spec=pltpu.PrefetchScalarGridSpec(
            num_scalar_prefetch=0,
            grid=(num_tiles, num_tiles),
            in_specs=[
                # Left slab depends only on i -> stays resident across j.
                pl.BlockSpec((b_pad, td), lambda i, j: (0, i)),
                # Right slab streamed along j (auto double-buffered, bf16).
                pl.BlockSpec((b_pad, td), lambda i, j: (0, j)),
            ],
            out_specs=pl.BlockSpec((1, _LANE), lambda i, j: (0, i)),
        ),
        compiler_params=pltpu.CompilerParams(
            dimension_semantics=("parallel", "arbitrary"),
            vmem_limit_bytes=_vmem_limit(_main_vmem(td)),
        ),
    )(zl, zr)

    # One partial per row tile (replicated across its 128-lane block).
    per_tile = partials.reshape(num_tiles, _LANE)[:, 0]
    # Each padded feature column has z == 0 -> contributes exactly +1.0 via
    # its (0 - 1)^2 on-diagonal term; remove it.
    return jnp.sum(per_tile) - jnp.float32(feat_pad)


def _barlow_twins_loss_ref(xl, xr, offdiag_lambda=1.0, eps=1e-12):
    """Pure-JAX f32 reference mirroring the PyTorch forward."""
    xl = xl.astype(jnp.float32)
    xr = xr.astype(jnp.float32)
    B = xl.shape[0]
    zl = (xl - xl.mean(0)) / jnp.sqrt(xl.var(0, ddof=1) + eps)
    zr = (xr - xr.mean(0)) / jnp.sqrt(xr.var(0, ddof=1) + eps)
    cc = (zl.T @ zr) / B
    on = jnp.sum((jnp.diag(cc) - 1.0) ** 2)
    off = jnp.sum(cc ** 2) - jnp.sum(jnp.diag(cc) ** 2)
    return on + offdiag_lambda * off


if __name__ == "__main__":
    key = jax.random.PRNGKey(0)
    k1, k2, k3, k4 = jax.random.split(key, 4)

    def l2norm(x):
        return x / jnp.maximum(jnp.linalg.norm(x, axis=1, keepdims=True), 1e-12)

    # Case 1: tiny single-tile shape (features padded 64 -> 128).
    el1 = l2norm(jax.random.uniform(k1, (16, 64), dtype=jnp.float32))
    er1 = l2norm(jax.random.uniform(k2, (16, 64), dtype=jnp.float32))
    loss1 = jax.block_until_ready(barlow_twins_loss(el1, er1, offdiag_lambda=1.0))
    ref1 = _barlow_twins_loss_ref(el1, er1, offdiag_lambda=1.0)
    # bf16 MXU operands (f32 accumulation) -> allow small relative drift.
    assert jnp.allclose(loss1, ref1, rtol=2e-2, atol=1e-2), (loss1, ref1)

    # Case 2: 2x2 tile grid with feature padding (192 -> 256) and the
    # canonical small off-diagonal weight.
    el2 = l2norm(jax.random.uniform(k3, (32, 192), dtype=jnp.float32))
    er2 = l2norm(jax.random.uniform(k4, (32, 192), dtype=jnp.float32))
    loss2 = jax.block_until_ready(
        barlow_twins_loss(el2, er2, offdiag_lambda=0.005, tile_d=128))
    ref2 = _barlow_twins_loss_ref(el2, er2, offdiag_lambda=0.005)
    assert jnp.allclose(loss2, ref2, rtol=2e-2, atol=1e-2), (loss2, ref2)

    print("KERNEL_OK")
</pallas_src>

<mosaic_0001>
module attributes {stable_mosaic.version = 11 : i64} {
  func.func @_standardize_kernel(%arg0: i32, %arg1: memref<16x128xf32, #tpu.memory_space<vmem>>, %arg2: memref<16x128xf32, #tpu.memory_space<vmem>>, %arg3: memref<16x128xbf16, #tpu.memory_space<vmem>>, %arg4: memref<16x128xbf16, #tpu.memory_space<vmem>>) attributes {dimension_semantics = [#tpu.dimension_semantics<parallel>], iteration_bounds = array<i64: 1>, scalar_prefetch = 0 : i64, scratch_operands = 0 : i64, tpu.core_type = #tpu.core_type<tc>, window_params = [{transform_indices = @transform_0, window_bounds = array<i64: 16, 128>}, {transform_indices = @transform_1, window_bounds = array<i64: 16, 128>}, {transform_indices = @transform_2, window_bounds = array<i64: 16, 128>}, {transform_indices = @transform_3, window_bounds = array<i64: 16, 128>}]} {
    %c0 = arith.constant 0 : index
    %c0_0 = arith.constant 0 : index
    %0 = vector.load %arg1[%c0, %c0_0] : memref<16x128xf32, #tpu.memory_space<vmem>>, vector<16x128xf32>
    %cst = arith.constant dense<0.000000e+00> : vector<128xf32>
    %1 = vector.multi_reduction <add>, %0, %cst [0] : vector<16x128xf32> to vector<128xf32>
    %2 = vector.shape_cast %1 : vector<128xf32> to vector<1x128xf32>
    %cst_1 = arith.constant 6.250000e-02 : f32
    %3 = vector.broadcast %cst_1 : f32 to vector<1x128xf32>
    %4 = arith.mulf %2, %3 : vector<1x128xf32>
    %5 = vector.broadcast %4 : vector<1x128xf32> to vector<16x128xf32>
    %6 = arith.subf %0, %5 : vector<16x128xf32>
    %7 = arith.mulf %6, %6 : vector<16x128xf32>
    %cst_2 = arith.constant dense<0.000000e+00> : vector<128xf32>
    %8 = vector.multi_reduction <add>, %7, %cst_2 [0] : vector<16x128xf32> to vector<128xf32>
    %9 = vector.shape_cast %8 : vector<128xf32> to vector<1x128xf32>
    %cst_3 = arith.constant 0.0666666701 : f32
    %10 = vector.broadcast %cst_3 : f32 to vector<1x128xf32>
    %11 = arith.mulf %9, %10 : vector<1x128xf32>
    %cst_4 = arith.constant 9.99999996E-13 : f32
    %12 = vector.broadcast %cst_4 : f32 to vector<1x128xf32>
    %13 = arith.addf %11, %12 : vector<1x128xf32>
    %14 = math.rsqrt %13 : vector<1x128xf32>
    %15 = vector.broadcast %14 : vector<1x128xf32> to vector<16x128xf32>
    %16 = arith.mulf %6, %15 : vector<16x128xf32>
    %17 = arith.truncf %16 : vector<16x128xf32> to vector<16x128xbf16>
    %c0_5 = arith.constant 0 : index
    %c0_6 = arith.constant 0 : index
    %18 = vector.load %arg3[%c0_5, %c0_6] : memref<16x128xbf16, #tpu.memory_space<vmem>>, vector<16x128xbf16>
    tpu.vector_store %arg3[%c0_5, %c0_6], %17 {strides = array<i32>} : memref<16x128xbf16, #tpu.memory_space<vmem>>, vector<16x128xbf16>,
    %c0_7 = arith.constant 0 : index
    %c0_8 = arith.constant 0 : index
    %19 = vector.load %arg2[%c0_7, %c0_8] : memref<16x128xf32, #tpu.memory_space<vmem>>, vector<16x128xf32>
    %cst_9 = arith.constant dense<0.000000e+00> : vector<128xf32>
    %20 = vector.multi_reduction <add>, %19, %cst_9 [0] : vector<16x128xf32> to vector<128xf32>
    %21 = vector.shape_cast %20 : vector<128xf32> to vector<1x128xf32>
    %cst_10 = arith.constant 6.250000e-02 : f32
    %22 = vector.broadcast %cst_10 : f32 to vector<1x128xf32>
    %23 = arith.mulf %21, %22 : vector<1x128xf32>
    %24 = vector.broadcast %23 : vector<1x128xf32> to vector<16x128xf32>
    %25 = arith.subf %19, %24 : vector<16x128xf32>
    %26 = arith.mulf %25, %25 : vector<16x128xf32>
    %cst_11 = arith.constant dense<0.000000e+00> : vector<128xf32>
    %27 = vector.multi_reduction <add>, %26, %cst_11 [0] : vector<16x128xf32> to vector<128xf32>
    %28 = vector.shape_cast %27 : vector<128xf32> to vector<1x128xf32>
    %cst_12 = arith.constant 0.0666666701 : f32
    %29 = vector.broadcast %cst_12 : f32 to vector<1x128xf32>
    %30 = arith.mulf %28, %29 : vector<1x128xf32>
    %cst_13 = arith.constant 9.99999996E-13 : f32
    %31 = vector.broadcast %cst_13 : f32 to vector<1x128xf32>
    %32 = arith.addf %30, %31 : vector<1x128xf32>
    %33 = math.rsqrt %32 : vector<1x128xf32>
    %34 = vector.broadcast %33 : vector<1x128xf32> to vector<16x128xf32>
    %35 = arith.mulf %25, %34 : vector<16x128xf32>
    %36 = arith.truncf %35 : vector<16x128xf32> to vector<16x128xbf16>
    %c0_14 = arith.constant 0 : index
    %c0_15 = arith.constant 0 : index
    %37 = vector.load %arg4[%c0_14, %c0_15] : memref<16x128xbf16, #tpu.memory_space<vmem>>, vector<16x128xbf16>
    tpu.vector_store %arg4[%c0_14, %c0_15], %36 {strides = array<i32>} : memref<16x128xbf16, #tpu.memory_space<vmem>>, vector<16x128xbf16>,
    return
  }
  func.func @transform_0(%arg0: i32) -> (i32, i32) {
    %c0_i32 = arith.constant 0 : i32
    %c0_i32_0 = arith.constant 0 : i32
    return %c0_i32, %arg0 : i32, i32
  }
  func.func @transform_1(%arg0: i32) -> (i32, i32) {
    %c0_i32 = arith.constant 0 : i32
    %c0_i32_0 = arith.constant 0 : i32
    return %c0_i32, %arg0 : i32, i32
  }
  func.func @transform_2(%arg0: i32) -> (i32, i32) {
    %c0_i32 = arith.constant 0 : i32
    %c0_i32_0 = arith.constant 0 : i32
    return %c0_i32, %arg0 : i32, i32
  }
  func.func @transform_3(%arg0: i32) -> (i32, i32) {
    %c0_i32 = arith.constant 0 : i32
    %c0_i32_0 = arith.constant 0 : i32
    return %c0_i32, %arg0 : i32, i32
  }
}

</mosaic_0001>

<llo_original>
// kernel: tpu_custom_call.1
$region0: #{tpu_custom_call.1}
  #allocation0 [shape = 'u32[]', space=smem, size = 0x4, offset = 0x4, fixed_abs, tag = 'smem constant byte address 0x4 - core index']
  #allocation1 [shape = 'u32[144,128]{1,0:T(1,128)}', space=vmem, size = 0x12000, scoped, tag = 'internal scratch']
  %s0 = inlined_call_operand.hbm [shape: f32[16,128], index: 0, kind: input, shape index: {}]
  %s1 = inlined_call_operand.hbm [shape: f32[16,128], index: 1, kind: input, shape index: {}]
  %s2 = inlined_call_operand.hbm [shape: bf16[16,128], index: 2, kind: output, shape index: {0}]
  %s3 = inlined_call_operand.hbm [shape: bf16[16,128], index: 3, kind: output, shape index: {1}]
  %4 = xla_tuple %s2, %s3
  %s5 = sld [smem:[#allocation0]]
  $region34: #{tpu_custom_call.1} parent=0
    _
  %s7 = ssub.s32 1, %s5
  %s8 = scalar_select 0, %s7, %s5
  $region1: #{tpu_custom_call.1} parent=0
    #allocation2 [shape = 'u8[8192]{0}', space=vmem, size = 0x2000, scoped, tag = 'input window, operand 0, single buffered']
    #allocation3 [shape = 's32[1]{0}', space=sflag, size = 0x4, scoped, tag = 'scoped memory for tpu_custom_call.1']
    #allocation4 [shape = 's32[1]{0}', space=sflag, size = 0x4, scoped, tag = 'scoped memory for tpu_custom_call.1']
    #allocation5 [shape = 'u8[8192]{0}', space=vmem, size = 0x2000, scoped, tag = 'input window, operand 1, single buffered']
    #allocation6 [shape = 's32[1]{0}', space=sflag, size = 0x4, scoped, tag = 'scoped memory for tpu_custom_call.1']
    #allocation7 [shape = 'u8[4096]{0}', space=vmem, size = 0x1000, scoped, tag = 'output window, operand 0, single buffered']
    #allocation8 [shape = 'u8[4096]{0}', space=vmem, size = 0x1000, scoped, tag = 'output window, operand 1, single buffered']
    #allocation9 [shape = 's32[1]{0}', space=sflag, size = 0x4, scoped, tag = 'scoped memory for tpu_custom_call.1']
    %9 = vsyncpa [#allocation3], 0
    %10 = vsyncpa [#allocation6], 0
    %11 = vsyncpa [#allocation4], 0
    %12 = vsyncpa [#allocation9], 0
    // Predicated region
    $region2: #{tpu_custom_call.1} parent=1 // pred_check
      _
    $region3: #{tpu_custom_call.1} parent=1 // pred_check_branch
      %14 = sbr.rel (0) target = $region5
    $region4: #{tpu_custom_call.1} parent=1 // pred_region
      %s16 = ssub.s32 256, 256
      %17 = vsyncadd [#allocation3], %s16
      %s18 = sshll.u32 [#allocation2], 4
      %s19 = int_to_ptr.vmem [resolvable:$true] %s18
      %24 = dma.hbm_to_vmem [thread:$0]  %s0, 256, %s19, [#allocation3], 128, 128, 8
    $region5: #{tpu_custom_call.1} parent=1 // pred_fallthru
      _
    // Predicated region
    $region6: #{tpu_custom_call.1} parent=1 // pred_check
      _
    $region7: #{tpu_custom_call.1} parent=1 // pred_check_branch
      %26 = sbr.rel (0) target = $region9
    $region8: #{tpu_custom_call.1} parent=1 // pred_region
      %s28 = ssub.s32 256, 256
      %29 = vsyncadd [#allocation6], %s28
      %s30 = sshll.u32 [#allocation5], 4
      %s31 = int_to_ptr.vmem [resolvable:$true] %s30
      %36 = dma.hbm_to_vmem [thread:$0]  %s1, 256, %s31, [#allocation6], 128, 128, 8
    $region9: #{tpu_custom_call.1} parent=1 // pred_fallthru
      _
    // Predicated region
    $region10: #{tpu_custom_call.1} parent=1 // pred_check
      _
    $region11: #{tpu_custom_call.1} parent=1 // pred_check_branch
      %38 = sbr.rel (0) target = $region13
    $region12: #{tpu_custom_call.1} parent=1 // pred_region
      %39 = dma.done [#allocation3], 256
    $region13: #{tpu_custom_call.1} parent=1 // pred_fallthru
      _
    // Predicated region
    $region14: #{tpu_custom_call.1} parent=1 // pred_check
      _
    $region15: #{tpu_custom_call.1} parent=1 // pred_check_branch
      %41 = sbr.rel (0) target = $region17
    $region16: #{tpu_custom_call.1} parent=1 // pred_region
      %42 = dma.done [#allocation6], 256
    $region17: #{tpu_custom_call.1} parent=1 // pred_fallthru
      _
    %v43 = vld [vmem:[#allocation2] sm:$0xff]
    %v44 = vld [vmem:[#allocation2 + $0x8] sm:$0xff]
    %v45 = vadd.f32 %v43, %v44
    %v46 = vrot.slane %v45, 4
    %v47 = vadd.f32 %v45, %v46
    %v48 = vrot.slane %v47, 2
    %v49 = vadd.f32 %v47, %v48
    %v50 = vrot.slane %v49, 1
    %v51 = vadd.f32 %v49, %v50
    %v52 = vmul.f32 %v51, 0.0625
    %v53 = vsub.f32 %v43, %v52
    %v54 = vsub.f32 %v44, %v52
    %v55 = vmul.f32 %v53, %v53
    %v56 = vmul.f32 %v54, %v54
    %v57 = vadd.f32 %v55, %v56
    %v58 = vrot.slane %v57, 4
    %v59 = vadd.f32 %v57, %v58
    %v60 = vrot.slane %v59, 2
    %v61 = vadd.f32 %v59, %v60
    %v62 = vrot.slane %v61, 1
    %v63 = vadd.f32 %v61, %v62
    %v64 = vmul.f32 %v63, 0.06666667
    %v65 = vadd.f32 %v64, 1e-12
    %v66 = vrsqrt.pop %v65
    %v67 = vmul.f32 %v53, %v66
    %v68 = vmul.f32 %v54, %v66
    %v69 = vpack.c.bf16 %v68, %v67
    %v71 = vunpack.c.l.b16 %v69
    %v72 = vunpack.c.h.b16 %v69
    %v73 = vpack.c.b16 %v71, %v71
    %v74 = vpack.c.b16 %v72, %v72
    %77 = vst [vmem:[#allocation7] sm:$0xf] %v73
    %78 = vst [vmem:[#allocation7 + $0x4] sm:$0xf] %v74
    %v79 = vld [vmem:[#allocation5] sm:$0xff]
    %v80 = vld [vmem:[#allocation5 + $0x8] sm:$0xff]
    %v81 = vadd.f32 %v79, %v80
    %v82 = vrot.slane %v81, 4
    %v83 = vadd.f32 %v81, %v82
    %v84 = vrot.slane %v83, 2
    %v85 = vadd.f32 %v83, %v84
    %v86 = vrot.slane %v85, 1
    %v87 = vadd.f32 %v85, %v86
    %v88 = vmul.f32 %v87, 0.0625
    %v89 = vsub.f32 %v79, %v88
    %v90 = vsub.f32 %v80, %v88
    %v91 = vmul.f32 %v89, %v89
    %v92 = vmul.f32 %v90, %v90
    %v93 = vadd.f32 %v91, %v92
    %v94 = vrot.slane %v93, 4
    %v95 = vadd.f32 %v93, %v94
    %v96 = vrot.slane %v95, 2
    %v97 = vadd.f32 %v95, %v96
    %v98 = vrot.slane %v97, 1
    %v99 = vadd.f32 %v97, %v98
    %v100 = vmul.f32 %v99, 0.06666667
    %v101 = vadd.f32 %v100, 1e-12
    %v102 = vrsqrt.pop %v101
    %v103 = vmul.f32 %v89, %v102
    %v104 = vmul.f32 %v90, %v102
    %v105 = vpack.c.bf16 %v104, %v103
    %v107 = vunpack.c.l.b16 %v105
    %v108 = vunpack.c.h.b16 %v105
    %v109 = vpack.c.b16 %v107, %v107
    %v110 = vpack.c.b16 %v108, %v108
    %113 = vst [vmem:[#allocation8] sm:$0xf] %v109
    %114 = vst [vmem:[#allocation8 + $0x4] sm:$0xf] %v110
    // Predicated region
    $region18: #{tpu_custom_call.1} parent=1 // pred_check
      _
    $region19: #{tpu_custom_call.1} parent=1 // pred_check_branch
      %116 = sbr.rel (0) target = $region21
    $region20: #{tpu_custom_call.1} parent=1 // pred_region
      %s118 = ssub.s32 128, 128
      %119 = vsyncadd [#allocation4], %s118
      %s120 = sshll.u32 [#allocation7], 4
      %s121 = int_to_ptr.vmem [resolvable:$true] %s120
      %126 = dma.vmem_to_hbm [thread:$0]  %s121, 128, %s2, [#allocation4], 64, 64, 4
    $region21: #{tpu_custom_call.1} parent=1 // pred_fallthru
      _
    // Predicated region
    $region22: #{tpu_custom_call.1} parent=1 // pred_check
      _
    $region23: #{tpu_custom_call.1} parent=1 // pred_check_branch
      %128 = sbr.rel (0) target = $region25
    $region24: #{tpu_custom_call.1} parent=1 // pred_region
      %s130 = ssub.s32 128, 128
      %131 = vsyncadd [#allocation9], %s130
      %s132 = sshll.u32 [#allocation8], 4
      %s133 = int_to_ptr.vmem [resolvable:$true] %s132
      %138 = dma.vmem_to_hbm [thread:$0]  %s133, 128, %s3, [#allocation9], 64, 64, 4
    $region25: #{tpu_custom_call.1} parent=1 // pred_fallthru
      _
    // Predicated region
    $region26: #{tpu_custom_call.1} parent=1 // pred_check
      _
    $region27: #{tpu_custom_call.1} parent=1 // pred_check_branch
      %140 = sbr.rel (0) target = $region29
    $region28: #{tpu_custom_call.1} parent=1 // pred_region
      %141 = dma.done [#allocation4], 128
    $region29: #{tpu_custom_call.1} parent=1 // pred_fallthru
      _
    // Predicated region
    $region30: #{tpu_custom_call.1} parent=1 // pred_check
      _
    $region31: #{tpu_custom_call.1} parent=1 // pred_check_branch
      %143 = sbr.rel (0) target = $region33
    $region32: #{tpu_custom_call.1} parent=1 // pred_region
      %144 = dma.done [#allocation9], 128
    $region33: #{tpu_custom_call.1} parent=1 // pred_fallthru
      _
    %145 = vsyncpa [#allocation3], 1
    %146 = vsyncpa [#allocation6], 1
    %147 = vsyncpa [#allocation4], 1
    %148 = vsyncpa [#allocation9], 1

</llo_original>
